<compile_context>
chip_gen: v7x
topology: tpu7x:2x2x1
jax: 0.10.0
libtpu: 0.0.40
codegen_flags: <defaults>
</compile_context>

<pallas_src>
import functools

import jax
import jax.numpy as jnp
from jax.experimental import pallas as pl
from jax.experimental.pallas import tpu as pltpu


def _round_up(x, m):
    return ((x + m - 1) // m) * m


def _vmem_config():
    """Return (block_budget_bytes, vmem_limit_bytes) for the local TPU gen."""
    try:
        kind = jax.devices()[0].device_kind.lower()
    except Exception:
        kind = ""
    mib = 1024 * 1024
    if "v5" in kind:                 # v5e/v5p: 128 MiB physical VMEM, lowest HBM BW
        return 40 * mib, 64 * mib
    if "v6" in kind:                 # v6e: 128 MiB physical VMEM
        return 48 * mib, 96 * mib
    if "v7" in kind or "7x" in kind:  # v7x: 64 MiB physical VMEM per TensorCore
        return 32 * mib, 48 * mib
    return 20 * mib, 32 * mib        # unknown generation: conservative defaults


def _angle_loss_kernel(cos_ref, blend_ref, tgt_ref, loss_ref, *, gamma):
    """One batch tile.

    out[i, :] = cos[i, :] except out[i, tgt[i]] = blend[i]   (angular-margin blend)
    logpt[i]  = blend[i] - max(out[i]) - log(sum(exp(out[i] - max)))
    loss[i]   = -(1 - exp(logpt))**gamma * logpt
    """
    cos = cos_ref[...].astype(jnp.float32)       # (TB, C)
    blend = blend_ref[...]                       # (TB, 1) f32 blended target logit
    tgt = tgt_ref[...]                           # (TB, 1) int32
    tb, c = cos.shape

    col = jax.lax.broadcasted_iota(jnp.int32, (tb, c), 1)
    out = jnp.where(col == tgt, blend, cos)      # target column replaced in-place

    m = jnp.max(out, axis=1, keepdims=True)                       # (TB, 1)
    sumexp = jnp.sum(jnp.exp(out - m), axis=1, keepdims=True)     # (TB, 1)
    logpt = blend - m - jnp.log(sumexp)                           # (TB, 1)

    if gamma == 0.0:
        loss = -logpt
    else:
        pt = jnp.exp(logpt)
        loss = -((1.0 - pt) ** gamma) * logpt

    loss_ref[...] = loss


def angle_loss_pallas(cos_theta, phi_theta, target, lamb, gamma, *,
                      tile_rows=None):
    """cos_theta, phi_theta: (B, C) float (f32 or bf16); target: (B,) int.
    lamb, gamma: python floats. Returns scalar mean loss (f32)."""
    b, c = cos_theta.shape

    # Keep the HBM dtype of cos (bf16 stays bf16 -> half the DMA traffic);
    # upcast happens inside the kernel.  Non-float inputs promote to f32.
    if not jnp.issubdtype(cos_theta.dtype, jnp.floating):
        cos_theta = cos_theta.astype(jnp.float32)

    scale = 1.0 / (1.0 + float(lamb))
    tgt = target.reshape(b, 1).astype(jnp.int32)

    # Gather only the target column of cos/phi in the wrapper; the full phi
    # matrix never enters the kernel.  Blend once here -> (B,1) f32 side input.
    cos_t = jnp.take_along_axis(cos_theta, tgt, axis=1).astype(jnp.float32)
    phi_t = jnp.take_along_axis(phi_theta, tgt, axis=1).astype(jnp.float32)
    blend = cos_t + (phi_t - cos_t) * scale                        # (B, 1) f32

    # Tile sizing: dtype-aware sublane multiple, per-generation VMEM budget.
    itemsize = jnp.dtype(cos_theta.dtype).itemsize
    sub = max(8, 32 // max(itemsize, 1))        # 8 for f32, 16 for bf16
    budget, vmem_limit = _vmem_config()
    # Per row: double-buffered input block + ~2 full-tile f32 temporaries.
    row_bytes = c * (2 * itemsize + 8)
    if tile_rows is None:
        tb = max(sub, (budget // max(row_bytes, 1) // sub) * sub)
    else:
        tb = max(sub, (int(tile_rows) // sub) * sub)
    tb = min(tb, 2048)
    tb = min(tb, _round_up(b, sub))
    num_tiles = pl.cdiv(b, tb)

    kernel = functools.partial(_angle_loss_kernel, gamma=float(gamma))

    per_example = pl.pallas_call(
        kernel,
        out_shape=jax.ShapeDtypeStruct((b, 1), jnp.float32),
        grid_spec=pltpu.PrefetchScalarGridSpec(
            num_scalar_prefetch=0,
            grid=(num_tiles,),
            in_specs=[
                pl.BlockSpec((tb, c), lambda i: (i, 0)),   # cos: only big stream
                pl.BlockSpec((tb, 1), lambda i: (i, 0)),   # blended target logit
                pl.BlockSpec((tb, 1), lambda i: (i, 0)),   # target index
            ],
            out_specs=pl.BlockSpec((tb, 1), lambda i: (i, 0)),
        ),
        compiler_params=pltpu.CompilerParams(
            dimension_semantics=("parallel",),
            vmem_limit_bytes=vmem_limit,
        ),
    )(cos_theta, blend, tgt)

    # Ragged last tile rows are never written back (partial output block), so
    # per_example holds exactly B valid losses.
    return jnp.mean(per_example)


class AngleLossPallas:
    """Mirrors the PyTorch AngleLoss module's Python-side state (it / lamb
    schedule); the numerical forward pass runs in the Pallas kernel."""

    def __init__(self, gamma=0):
        self.gamma = gamma
        self.it = 0
        self.LambdaMin = 50.0
        self.LambdaMax = 1500.0
        self.lamb = 1500.0

    def __call__(self, inputs, target, decay=None):
        self.it += 1
        if decay is None:
            self.lamb = max(self.LambdaMin, self.LambdaMax / (1 + 0.1 * self.it))
        else:
            self.LambdaMax *= decay
            self.lamb = max(self.LambdaMin, self.LambdaMax)
        cos_theta, phi_theta = inputs
        return angle_loss_pallas(cos_theta, phi_theta, target, self.lamb,
                                 self.gamma)


def _reference_loss(cos_theta, phi_theta, target, lamb, gamma):
    # Pure-JAX reference for validation.
    b, c = cos_theta.shape
    mask = jax.nn.one_hot(target, c, dtype=jnp.float32)
    scale = 1.0 / (1.0 + lamb)
    cos_theta = cos_theta.astype(jnp.float32)
    phi_theta = phi_theta.astype(jnp.float32)
    output = cos_theta - mask * cos_theta * scale + mask * phi_theta * scale
    logp = jax.nn.log_softmax(output, axis=1)
    logpt = jnp.sum(mask * logp, axis=1)
    pt = jnp.exp(logpt)
    loss = -1.0 * (1.0 - pt) ** gamma * logpt
    return loss.mean()


if __name__ == "__main__":
    key = jax.random.PRNGKey(0)
    k1, k2, k3 = jax.random.split(key, 3)

    # Small test shapes consistent with the module's forward.
    B, C = 8, 16
    cos_theta = jax.random.uniform(k1, (B, C), jnp.float32, minval=-1.0, maxval=1.0)
    phi_theta = jax.random.uniform(k2, (B, C), jnp.float32, minval=-3.0, maxval=1.0)
    target = jax.random.randint(k3, (B,), 0, C, dtype=jnp.int32)

    loss_mod = AngleLossPallas(gamma=0)
    loss = loss_mod((cos_theta, phi_theta), target)
    loss = jax.block_until_ready(loss)
    ref = _reference_loss(cos_theta, phi_theta, target, loss_mod.lamb, loss_mod.gamma)
    assert jnp.allclose(loss, ref, rtol=1e-5, atol=1e-5), (loss, ref)

    # Second check: multiple batch tiles + a ragged (partial) last tile, gamma>0.
    B2, C2 = 20, 16
    k4, k5, k6 = jax.random.split(jax.random.PRNGKey(1), 3)
    cos2 = jax.random.uniform(k4, (B2, C2), jnp.float32, minval=-1.0, maxval=1.0)
    phi2 = jax.random.uniform(k5, (B2, C2), jnp.float32, minval=-3.0, maxval=1.0)
    tgt2 = jax.random.randint(k6, (B2,), 0, C2, dtype=jnp.int32)
    lamb2, gamma2 = 55.0, 2.0
    loss2 = jax.block_until_ready(
        angle_loss_pallas(cos2, phi2, tgt2, lamb2, gamma2, tile_rows=8))
    ref2 = _reference_loss(cos2, phi2, tgt2, lamb2, gamma2)
    assert jnp.allclose(loss2, ref2, rtol=1e-5, atol=1e-5), (loss2, ref2)

    # Third check: bf16 inputs exercise the 16-row sublane rounding path.
    cos3 = cos2.astype(jnp.bfloat16)
    phi3 = phi2.astype(jnp.bfloat16)
    loss3 = jax.block_until_ready(
        angle_loss_pallas(cos3, phi3, tgt2, lamb2, gamma2))
    ref3 = _reference_loss(cos3.astype(jnp.float32), phi3.astype(jnp.float32),
                           tgt2, lamb2, gamma2)
    assert jnp.allclose(loss3, ref3, rtol=1e-3, atol=1e-3), (loss3, ref3)

    print("KERNEL_OK")
</pallas_src>

<mosaic_0001>
module attributes {stable_mosaic.version = 11 : i64} {
  func.func @_angle_loss_kernel(%arg0: i32, %arg1: memref<8x16xf32, #tpu.memory_space<vmem>>, %arg2: memref<8x1xf32, #tpu.memory_space<vmem>>, %arg3: memref<8x1xi32, #tpu.memory_space<vmem>>, %arg4: memref<8x1xf32, #tpu.memory_space<vmem>>) attributes {dimension_semantics = [#tpu.dimension_semantics<parallel>], iteration_bounds = array<i64: 1>, scalar_prefetch = 0 : i64, scratch_operands = 0 : i64, tpu.core_type = #tpu.core_type<tc>, window_params = [{transform_indices = @transform_0, window_bounds = array<i64: 8, 16>}, {transform_indices = @transform_1, window_bounds = array<i64: 8, 1>}, {transform_indices = @transform_2, window_bounds = array<i64: 8, 1>}, {transform_indices = @transform_3, window_bounds = array<i64: 8, 1>}]} {
    %c0 = arith.constant 0 : index
    %c0_0 = arith.constant 0 : index
    %0 = vector.load %arg1[%c0, %c0_0] : memref<8x16xf32, #tpu.memory_space<vmem>>, vector<8x16xf32>
    %c0_1 = arith.constant 0 : index
    %c0_2 = arith.constant 0 : index
    %1 = vector.load %arg2[%c0_1, %c0_2] : memref<8x1xf32, #tpu.memory_space<vmem>>, vector<8x1xf32>
    %c0_3 = arith.constant 0 : index
    %c0_4 = arith.constant 0 : index
    %2 = vector.load %arg3[%c0_3, %c0_4] : memref<8x1xi32, #tpu.memory_space<vmem>>, vector<8x1xi32>
    %3 = tpu.iota {dimensions = array<i32: 1>} : vector<8x16xi32>
    %4 = vector.broadcast %2 : vector<8x1xi32> to vector<8x16xi32>
    %5 = arith.cmpi eq, %3, %4 : vector<8x16xi32>
    %6 = vector.shape_cast %1 : vector<8x1xf32> to vector<8x1xf32>
    %7 = vector.broadcast %6 : vector<8x1xf32> to vector<8x16xf32>
    %8 = arith.select %5, %7, %0 : vector<8x16xi1>, vector<8x16xf32>
    %cst = arith.constant dense<0xFF800000> : vector<8xf32>
    %9 = vector.multi_reduction <maximumf>, %8, %cst [1] : vector<8x16xf32> to vector<8xf32>
    %10 = vector.shape_cast %9 : vector<8xf32> to vector<8x1xf32>
    %11 = vector.broadcast %10 : vector<8x1xf32> to vector<8x16xf32>
    %12 = arith.subf %8, %11 : vector<8x16xf32>
    %13 = math.exp %12 : vector<8x16xf32>
    %cst_5 = arith.constant dense<0.000000e+00> : vector<8xf32>
    %14 = vector.multi_reduction <add>, %13, %cst_5 [1] : vector<8x16xf32> to vector<8xf32>
    %15 = vector.shape_cast %14 : vector<8xf32> to vector<8x1xf32>
    %16 = arith.subf %1, %10 : vector<8x1xf32>
    %17 = math.log %15 : vector<8x1xf32>
    %18 = arith.subf %16, %17 : vector<8x1xf32>
    %cst_6 = arith.constant 0.000000e+00 : f32
    %19 = vector.broadcast %cst_6 : f32 to vector<8x1xf32>
    %20 = arith.subf %19, %18 : vector<8x1xf32>
    %c0_7 = arith.constant 0 : index
    %c0_8 = arith.constant 0 : index
    %21 = vector.load %arg4[%c0_7, %c0_8] : memref<8x1xf32, #tpu.memory_space<vmem>>, vector<8x1xf32>
    tpu.vector_store %arg4[%c0_7, %c0_8], %20 {strides = array<i32>} : memref<8x1xf32, #tpu.memory_space<vmem>>, vector<8x1xf32>,
    return
  }
  func.func @transform_0(%arg0: i32) -> (i32, i32) {
    %c0_i32 = arith.constant 0 : i32
    %c0_i32_0 = arith.constant 0 : i32
    return %arg0, %c0_i32 : i32, i32
  }
  func.func @transform_1(%arg0: i32) -> (i32, i32) {
    %c0_i32 = arith.constant 0 : i32
    %c0_i32_0 = arith.constant 0 : i32
    return %arg0, %c0_i32 : i32, i32
  }
  func.func @transform_2(%arg0: i32) -> (i32, i32) {
    %c0_i32 = arith.constant 0 : i32
    %c0_i32_0 = arith.constant 0 : i32
    return %arg0, %c0_i32 : i32, i32
  }
  func.func @transform_3(%arg0: i32) -> (i32, i32) {
    %c0_i32 = arith.constant 0 : i32
    %c0_i32_0 = arith.constant 0 : i32
    return %arg0, %c0_i32 : i32, i32
  }
}

</mosaic_0001>

<llo_original>
// kernel: tpu_custom_call.1
$region0: #{tpu_custom_call.1}
  #allocation0 [shape = 'u32[]', space=smem, size = 0x4, offset = 0x4, fixed_abs, tag = 'smem constant byte address 0x4 - core index']
  #allocation1 [shape = 'u32[144,128]{1,0:T(1,128)}', space=vmem, size = 0x12000, scoped, tag = 'internal scratch']
  %s0 = inlined_call_operand.vmem [shape: f32[8,16], index: 0, kind: input, shape index: {}]
  %s1 = inlined_call_operand.vmem [shape: f32[8,1], index: 1, kind: input, shape index: {}]
  %s2 = inlined_call_operand.vmem [shape: s32[8,1], index: 2, kind: input, shape index: {}]
  %s3 = inlined_call_operand.vmem [shape: f32[8,1], index: 3, kind: output, shape index: {}]
  %s4 = sld [smem:[#allocation0]]
  $region22: #{tpu_custom_call.1} parent=0
    _
  %s6 = ssub.s32 1, %s4
  %s7 = scalar_select 0, %s6, %s4
  // Predicated region
  $region2: #{tpu_custom_call.1} parent=0 // pred_check
    _
  $region3: #{tpu_custom_call.1} parent=0 // pred_check_branch
    %9 = sbr.rel (0) target = $region5
  $region4: #{tpu_custom_call.1} parent=0 // pred_region
    _
  $region5: #{tpu_custom_call.1} parent=0 // pred_fallthru
    _
  // Predicated region
  $region6: #{tpu_custom_call.1} parent=0 // pred_check
    _
  $region7: #{tpu_custom_call.1} parent=0 // pred_check_branch
    %11 = sbr.rel (0) target = $region9
  $region8: #{tpu_custom_call.1} parent=0 // pred_region
    _
  $region9: #{tpu_custom_call.1} parent=0 // pred_fallthru
    _
  // Predicated region
  $region10: #{tpu_custom_call.1} parent=0 // pred_check
    _
  $region11: #{tpu_custom_call.1} parent=0 // pred_check_branch
    %13 = sbr.rel (0) target = $region13
  $region12: #{tpu_custom_call.1} parent=0 // pred_region
    _
  $region13: #{tpu_custom_call.1} parent=0 // pred_fallthru
    _
  %v14 = vld [vmem:[%s0] sm:$0xff]
  %v15 = vld [vmem:[%s1] sm:$0xff]
  %v16 = vld [vmem:[%s2] sm:$0xff]
  %v17 = vlaneseq
  %v18 = vand.u32 %v17, 127
  %19 = vset.pattern.permute.xlu0 0
  %20 = vperm.xlu0 %19, %v16
  %v21 = vpop.permute.xlu0 %20
  %vm22 = vcmp.eq.s32.totalorder %v18, %v21
  %24 = vset.pattern.permute.xlu0 0
  %25 = vperm.xlu0 %24, %v15
  %v26 = vpop.permute.xlu0 %25
  %v28 = vsel %vm22, %v26, %v14
  %vm29 = vcmask 130048
  %v30 = vsel %vm29, %v28, -inf
  %31 = vmax.xlane.f32.xlu0 %v30
  %v32 = vpop.xlane.xlu0 %31
  %v33 = vsub.f32 %v28, %v32
  %v34 = vmul.f32 %v33, 1.442695
  %v35 = vpow.pop %v34
  %v36 = vsel %vm29, %v35, 0.0
  %37 = vadd.xlane.f32.xlu0 %v36
  %v38 = vpop.xlane.xlu0 %37
  %v39 = vsub.f32 %v15, %v32
  %v40 = vlog2.pop %v38
  %v41 = vmul.f32 %v40, 0.6931472
  %v42 = vsub.f32 %v39, %v41
  %v43 = vsub.f32 0.0, %v42
  %vm44 = vcmask 7168
  %45 = vst.msk [vmem:[%s3] sm:$0xff] %vm44, %v43
  // Predicated region
  $region14: #{tpu_custom_call.1} parent=0 // pred_check
    _
  $region15: #{tpu_custom_call.1} parent=0 // pred_check_branch
    %47 = sbr.rel (0) target = $region17
  $region16: #{tpu_custom_call.1} parent=0 // pred_region
    _
  $region17: #{tpu_custom_call.1} parent=0 // pred_fallthru
    _
  // Predicated region
  $region18: #{tpu_custom_call.1} parent=0 // pred_check
    _
  $region19: #{tpu_custom_call.1} parent=0 // pred_check_branch
    %49 = sbr.rel (0) target = $region21
  $region20: #{tpu_custom_call.1} parent=0 // pred_region
    _
  $region21: #{tpu_custom_call.1} parent=0 // pred_fallthru
    _

</llo_original>
